<compile_context>
chip_gen: v6e
topology: v6e:2x2x1
jax: 0.10.0
libtpu: 0.0.40
codegen_flags: <defaults>
</compile_context>

<pallas_src>
import functools

import jax
import jax.numpy as jnp
from jax.experimental import pallas as pl
from jax.experimental.pallas import tpu as pltpu

LANES = 128
MIN_GRID_STEPS = 8   # >= 4 steps per TensorCore on v7x once data is big enough


def _round_up(a, b):
    return ((a + b - 1) // b) * b


def _dlm_kernel(params_ref, x_ref, o_ref, *, d, n_mix):
    # params_ref: flat (5*K,) f32 in SMEM, row-major rows =
    #   [pi, inv_scale, mean, cdf_plus_edge, one_minus_cdf_min_edge]
    # x_ref / o_ref: (TILE_ROWS, 128) f32 in VMEM (lane/sublane dense).
    x = x_ref[...]

    # Edge masks & shifted x: computed once per tile, reused across all K mixtures.
    is_low = x < 0.001
    is_high = x > d - 1.0 - 0.001
    xp = x + 0.5
    xm = x - 0.5

    # Probability-domain accumulation (see header): one exp-family op per sigmoid,
    # single log at the end.  K is small & static -> unrolled, pure VPU/EUP work.
    s = jnp.zeros_like(x)
    for k in range(n_mix):
        pi_k = params_ref[0 * n_mix + k]
        inv_s = params_ref[1 * n_mix + k]
        mean = params_ref[2 * n_mix + k]
        cdf_plus_e = params_ref[3 * n_mix + k]
        omcdf_min_e = params_ref[4 * n_mix + k]

        # Same operation association as the reference: inv_s * ((x + 0.5) - mean)
        plus_in = inv_s * (xp - mean)
        min_in = inv_s * (xm - mean)
        cdf_delta = jax.nn.sigmoid(plus_in) - jax.nn.sigmoid(min_in)

        p = jnp.where(is_low, cdf_plus_e, jnp.where(is_high, omcdf_min_e, cdf_delta))
        s = s + pi_k * jnp.maximum(p, 1e-12)

    # s >= 1e-12 * sum(pi) == 1e-12, so the single closing log is always finite.
    o_ref[...] = jnp.log(s)


def dlm_forward(x, logits, means, log_scales, d, *, tile_rows=512):
    """Pallas implementation of DiscretizedLogisticMixture.forward -> log-probs (N,)."""
    n = x.shape[0]
    k = logits.shape[0]
    d_f = float(d)

    # ---- hoisted parameter-only math (computed once, on K-element vectors) ----
    logits_f = logits.astype(jnp.float32)
    means_f = means.astype(jnp.float32)
    log_scales_f = log_scales.astype(jnp.float32)
    inv_scales = jnp.exp(-log_scales_f)
    pi = jax.nn.softmax(logits_f)                                   # mixture weights
    cdf_plus_edge = jax.nn.sigmoid(inv_scales * (0.5 - means_f))    # x == 0 branch
    one_minus_cdf_min_edge = 1.0 - jax.nn.sigmoid(
        inv_scales * (d_f - 1.5 - means_f))                         # x == d-1 branch
    # flat (5*K,) so SMEM does not pad to an 8x128-word tile
    params = jnp.stack(
        [pi, inv_scales, means_f, cdf_plus_edge, one_minus_cdf_min_edge], axis=0
    ).reshape(-1)

    # ---- dense (rows, 128) layout + tiling ----
    n_rows = _round_up(max(pl.cdiv(n, LANES), 1), 8)
    tile_rows = _round_up(max(int(tile_rows), 8), 8)
    if n_rows >= MIN_GRID_STEPS * 8:
        # keep >= MIN_GRID_STEPS steps so the "parallel" axis can shard across
        # v7x's 2 TensorCores with several steps per core (prefetch overlap).
        tile_rows = min(tile_rows, _round_up(pl.cdiv(n_rows, MIN_GRID_STEPS), 8))
    else:
        tile_rows = min(tile_rows, n_rows)
    n_rows_pad = _round_up(n_rows, tile_rows)
    grid_n = n_rows_pad // tile_rows
    n_pad = n_rows_pad * LANES

    # zero-padding falls into the x < 0.001 branch (finite) and is sliced off below
    x_p = jnp.zeros((n_pad,), jnp.float32).at[:n].set(x.astype(jnp.float32))
    x2 = x_p.reshape(n_rows_pad, LANES)

    x_spec = pl.BlockSpec((tile_rows, LANES), lambda i: (i, 0))
    if grid_n >= 3:
        # deeper input buffering: keeps v5e's slower HBM covered after the EUP cut
        x_spec = pl.BlockSpec((tile_rows, LANES), lambda i: (i, 0),
                              pipeline_mode=pl.Buffered(3))

    out = pl.pallas_call(
        functools.partial(_dlm_kernel, d=d_f, n_mix=k),
        out_shape=jax.ShapeDtypeStruct((n_rows_pad, LANES), jnp.float32),
        grid=(grid_n,),
        in_specs=[
            pl.BlockSpec(memory_space=pltpu.MemorySpace.SMEM),  # flat (5*K,) params
            x_spec,
        ],
        out_specs=pl.BlockSpec((tile_rows, LANES), lambda i: (i, 0)),
        # TODO(synk): verify on v7x that "parallel" actually shards this axis across
        # both TensorCores; if not, switch this axis to pltpu.CORE_PARALLEL.
        compiler_params=pltpu.CompilerParams(dimension_semantics=("parallel",)),
    )(params, x2)
    return out.reshape(n_pad)[:n]


def dlm_forward_ref(x, logits, means, log_scales, d):
    """Pure-JAX reference matching the PyTorch forward exactly."""
    x = x.astype(jnp.float32)[:, None]
    means_b = means.astype(jnp.float32)[None, :]
    log_scales_b = log_scales.astype(jnp.float32)[None, :]
    inv_scales = jnp.exp(-log_scales_b)
    plus_in = inv_scales * (x + 0.5 - means_b)
    min_in = inv_scales * (x - 0.5 - means_b)
    cdf_delta = jax.nn.sigmoid(plus_in) - jax.nn.sigmoid(min_in)
    log_cdf_delta = jnp.log(jnp.maximum(cdf_delta, 1e-12))
    log_cdf_plus = jnp.log(jnp.maximum(jax.nn.sigmoid(inv_scales * (0.5 - means_b)), 1e-12))
    log_cdf_min = jnp.log(
        jnp.maximum(1.0 - jax.nn.sigmoid(inv_scales * (d - 1.5 - means_b)), 1e-12))
    x_log_probs = jnp.where(x < 0.001, log_cdf_plus,
                            jnp.where(x > d - 1 - 0.001, log_cdf_min, log_cdf_delta))
    pi_log_probs = jax.nn.log_softmax(logits.astype(jnp.float32))[None, :]
    return jax.scipy.special.logsumexp(x_log_probs + pi_log_probs, axis=1)


if __name__ == "__main__":
    d = 16          # support {0, ..., d-1}
    n_mix = 6

    key = jax.random.PRNGKey(0)
    k_logits, k_means, k_scales, k_x = jax.random.split(key, 4)

    # deterministic parameter init mirroring the module's __init__:
    #   logits ~ N(0,1); means = d * |N(0,1)|; log_scales ~ N(0,1)
    logits = jax.random.normal(k_logits, (n_mix,), jnp.float32)
    means = d * jnp.abs(jax.random.normal(k_means, (n_mix,), jnp.float32))
    log_scales = jax.random.normal(k_scales, (n_mix,), jnp.float32)

    # --- small batch: single-step grid path -----------------------------------
    n_small = 1024
    x_small = jax.random.randint(k_x, (n_small,), 0, d).astype(jnp.float32)
    out_small = jax.block_until_ready(dlm_forward(x_small, logits, means, log_scales, d))
    ref_small = dlm_forward_ref(x_small, logits, means, log_scales, d)
    assert out_small.shape == (n_small,) and out_small.dtype == jnp.float32
    assert jnp.allclose(out_small, ref_small, atol=1e-5, rtol=1e-5), (
        f"max abs err {jnp.max(jnp.abs(out_small - ref_small))}")

    # --- larger batch: exercises the multi-step / Buffered(3) pipeline path ----
    n_big = 40_000
    x_big = jax.random.randint(jax.random.PRNGKey(1), (n_big,), 0, d).astype(jnp.float32)
    out_big = jax.block_until_ready(dlm_forward(x_big, logits, means, log_scales, d))
    ref_big = dlm_forward_ref(x_big, logits, means, log_scales, d)
    assert out_big.shape == (n_big,) and out_big.dtype == jnp.float32
    assert jnp.allclose(out_big, ref_big, atol=1e-5, rtol=1e-5), (
        f"max abs err {jnp.max(jnp.abs(out_big - ref_big))}")

    print("KERNEL_OK")
</pallas_src>

<mosaic_0001>
module attributes {stable_mosaic.version = 11 : i64} {
  func.func @_dlm_kernel(%arg0: i32, %arg1: memref<30xf32, #tpu.memory_space<smem>>, %arg2: memref<8x128xf32, #tpu.memory_space<vmem>>, %arg3: memref<8x128xf32, #tpu.memory_space<vmem>>) attributes {dimension_semantics = [#tpu.dimension_semantics<parallel>], iteration_bounds = array<i64: 1>, scalar_prefetch = 0 : i64, scratch_operands = 0 : i64, tpu.core_type = #tpu.core_type<tc>, window_params = [{transform_indices = @transform_0, window_bounds = array<i64: 30>}, {transform_indices = @transform_1, window_bounds = array<i64: 8, 128>}, {transform_indices = @transform_2, window_bounds = array<i64: 8, 128>}]} {
    %c0 = arith.constant 0 : index
    %c0_0 = arith.constant 0 : index
    %0 = vector.load %arg2[%c0, %c0_0] : memref<8x128xf32, #tpu.memory_space<vmem>>, vector<8x128xf32>
    %cst = arith.constant 1.000000e-03 : f32
    %1 = vector.broadcast %cst : f32 to vector<8x128xf32>
    %2 = arith.cmpf olt, %0, %1 : vector<8x128xf32>
    %cst_1 = arith.constant 1.499900e+01 : f32
    %3 = vector.broadcast %cst_1 : f32 to vector<8x128xf32>
    %4 = arith.cmpf ogt, %0, %3 : vector<8x128xf32>
    %cst_2 = arith.constant 5.000000e-01 : f32
    %5 = vector.broadcast %cst_2 : f32 to vector<8x128xf32>
    %6 = arith.addf %0, %5 : vector<8x128xf32>
    %cst_3 = arith.constant 5.000000e-01 : f32
    %7 = vector.broadcast %cst_3 : f32 to vector<8x128xf32>
    %8 = arith.subf %0, %7 : vector<8x128xf32>
    %cst_4 = arith.constant 0.000000e+00 : f32
    %9 = vector.broadcast %cst_4 : f32 to vector<8x128xf32>
    %c0_5 = arith.constant 0 : index
    %10 = memref.load %arg1[%c0_5] : memref<30xf32, #tpu.memory_space<smem>>
    %c6 = arith.constant 6 : index
    %11 = memref.load %arg1[%c6] : memref<30xf32, #tpu.memory_space<smem>>
    %c12 = arith.constant 12 : index
    %12 = memref.load %arg1[%c12] : memref<30xf32, #tpu.memory_space<smem>>
    %c18 = arith.constant 18 : index
    %13 = memref.load %arg1[%c18] : memref<30xf32, #tpu.memory_space<smem>>
    %c24 = arith.constant 24 : index
    %14 = memref.load %arg1[%c24] : memref<30xf32, #tpu.memory_space<smem>>
    %15 = vector.broadcast %12 : f32 to vector<8x128xf32>
    %16 = arith.subf %6, %15 : vector<8x128xf32>
    %17 = vector.broadcast %11 : f32 to vector<8x128xf32>
    %18 = arith.mulf %17, %16 : vector<8x128xf32>
    %19 = vector.broadcast %12 : f32 to vector<8x128xf32>
    %20 = arith.subf %8, %19 : vector<8x128xf32>
    %21 = vector.broadcast %11 : f32 to vector<8x128xf32>
    %22 = arith.mulf %21, %20 : vector<8x128xf32>
    %23 = arith.negf %18 : vector<8x128xf32>
    %24 = math.exp %23 : vector<8x128xf32>
    %cst_6 = arith.constant 1.000000e+00 : f32
    %25 = vector.broadcast %cst_6 : f32 to vector<8x128xf32>
    %26 = arith.addf %25, %24 : vector<8x128xf32>
    %27 = arith.divf %25, %26 : vector<8x128xf32>
    %28 = arith.negf %22 : vector<8x128xf32>
    %29 = math.exp %28 : vector<8x128xf32>
    %cst_7 = arith.constant 1.000000e+00 : f32
    %30 = vector.broadcast %cst_7 : f32 to vector<8x128xf32>
    %31 = arith.addf %30, %29 : vector<8x128xf32>
    %32 = arith.divf %30, %31 : vector<8x128xf32>
    %33 = arith.subf %27, %32 : vector<8x128xf32>
    %34 = vector.broadcast %14 : f32 to vector<8x128xf32>
    %35 = arith.select %4, %34, %33 : vector<8x128xi1>, vector<8x128xf32>
    %36 = vector.broadcast %13 : f32 to vector<8x128xf32>
    %37 = arith.select %2, %36, %35 : vector<8x128xi1>, vector<8x128xf32>
    %cst_8 = arith.constant 9.99999996E-13 : f32
    %38 = vector.broadcast %cst_8 : f32 to vector<8x128xf32>
    %39 = arith.maximumf %37, %38 : vector<8x128xf32>
    %40 = vector.broadcast %10 : f32 to vector<8x128xf32>
    %41 = arith.mulf %40, %39 : vector<8x128xf32>
    %42 = arith.addf %9, %41 : vector<8x128xf32>
    %c1 = arith.constant 1 : index
    %43 = memref.load %arg1[%c1] : memref<30xf32, #tpu.memory_space<smem>>
    %c7 = arith.constant 7 : index
    %44 = memref.load %arg1[%c7] : memref<30xf32, #tpu.memory_space<smem>>
    %c13 = arith.constant 13 : index
    %45 = memref.load %arg1[%c13] : memref<30xf32, #tpu.memory_space<smem>>
    %c19 = arith.constant 19 : index
    %46 = memref.load %arg1[%c19] : memref<30xf32, #tpu.memory_space<smem>>
    %c25 = arith.constant 25 : index
    %47 = memref.load %arg1[%c25] : memref<30xf32, #tpu.memory_space<smem>>
    %48 = vector.broadcast %45 : f32 to vector<8x128xf32>
    %49 = arith.subf %6, %48 : vector<8x128xf32>
    %50 = vector.broadcast %44 : f32 to vector<8x128xf32>
    %51 = arith.mulf %50, %49 : vector<8x128xf32>
    %52 = vector.broadcast %45 : f32 to vector<8x128xf32>
    %53 = arith.subf %8, %52 : vector<8x128xf32>
    %54 = vector.broadcast %44 : f32 to vector<8x128xf32>
    %55 = arith.mulf %54, %53 : vector<8x128xf32>
    %56 = arith.negf %51 : vector<8x128xf32>
    %57 = math.exp %56 : vector<8x128xf32>
    %cst_9 = arith.constant 1.000000e+00 : f32
    %58 = vector.broadcast %cst_9 : f32 to vector<8x128xf32>
    %59 = arith.addf %58, %57 : vector<8x128xf32>
    %60 = arith.divf %58, %59 : vector<8x128xf32>
    %61 = arith.negf %55 : vector<8x128xf32>
    %62 = math.exp %61 : vector<8x128xf32>
    %cst_10 = arith.constant 1.000000e+00 : f32
    %63 = vector.broadcast %cst_10 : f32 to vector<8x128xf32>
    %64 = arith.addf %63, %62 : vector<8x128xf32>
    %65 = arith.divf %63, %64 : vector<8x128xf32>
    %66 = arith.subf %60, %65 : vector<8x128xf32>
    %67 = vector.broadcast %47 : f32 to vector<8x128xf32>
    %68 = arith.select %4, %67, %66 : vector<8x128xi1>, vector<8x128xf32>
    %69 = vector.broadcast %46 : f32 to vector<8x128xf32>
    %70 = arith.select %2, %69, %68 : vector<8x128xi1>, vector<8x128xf32>
    %cst_11 = arith.constant 9.99999996E-13 : f32
    %71 = vector.broadcast %cst_11 : f32 to vector<8x128xf32>
    %72 = arith.maximumf %70, %71 : vector<8x128xf32>
    %73 = vector.broadcast %43 : f32 to vector<8x128xf32>
    %74 = arith.mulf %73, %72 : vector<8x128xf32>
    %75 = arith.addf %42, %74 : vector<8x128xf32>
    %c2 = arith.constant 2 : index
    %76 = memref.load %arg1[%c2] : memref<30xf32, #tpu.memory_space<smem>>
    %c8 = arith.constant 8 : index
    %77 = memref.load %arg1[%c8] : memref<30xf32, #tpu.memory_space<smem>>
    %c14 = arith.constant 14 : index
    %78 = memref.load %arg1[%c14] : memref<30xf32, #tpu.memory_space<smem>>
    %c20 = arith.constant 20 : index
    %79 = memref.load %arg1[%c20] : memref<30xf32, #tpu.memory_space<smem>>
    %c26 = arith.constant 26 : index
    %80 = memref.load %arg1[%c26] : memref<30xf32, #tpu.memory_space<smem>>
    %81 = vector.broadcast %78 : f32 to vector<8x128xf32>
    %82 = arith.subf %6, %81 : vector<8x128xf32>
    %83 = vector.broadcast %77 : f32 to vector<8x128xf32>
    %84 = arith.mulf %83, %82 : vector<8x128xf32>
    %85 = vector.broadcast %78 : f32 to vector<8x128xf32>
    %86 = arith.subf %8, %85 : vector<8x128xf32>
    %87 = vector.broadcast %77 : f32 to vector<8x128xf32>
    %88 = arith.mulf %87, %86 : vector<8x128xf32>
    %89 = arith.negf %84 : vector<8x128xf32>
    %90 = math.exp %89 : vector<8x128xf32>
    %cst_12 = arith.constant 1.000000e+00 : f32
    %91 = vector.broadcast %cst_12 : f32 to vector<8x128xf32>
    %92 = arith.addf %91, %90 : vector<8x128xf32>
    %93 = arith.divf %91, %92 : vector<8x128xf32>
    %94 = arith.negf %88 : vector<8x128xf32>
    %95 = math.exp %94 : vector<8x128xf32>
    %cst_13 = arith.constant 1.000000e+00 : f32
    %96 = vector.broadcast %cst_13 : f32 to vector<8x128xf32>
    %97 = arith.addf %96, %95 : vector<8x128xf32>
    %98 = arith.divf %96, %97 : vector<8x128xf32>
    %99 = arith.subf %93, %98 : vector<8x128xf32>
    %100 = vector.broadcast %80 : f32 to vector<8x128xf32>
    %101 = arith.select %4, %100, %99 : vector<8x128xi1>, vector<8x128xf32>
    %102 = vector.broadcast %79 : f32 to vector<8x128xf32>
    %103 = arith.select %2, %102, %101 : vector<8x128xi1>, vector<8x128xf32>
    %cst_14 = arith.constant 9.99999996E-13 : f32
    %104 = vector.broadcast %cst_14 : f32 to vector<8x128xf32>
    %105 = arith.maximumf %103, %104 : vector<8x128xf32>
    %106 = vector.broadcast %76 : f32 to vector<8x128xf32>
    %107 = arith.mulf %106, %105 : vector<8x128xf32>
    %108 = arith.addf %75, %107 : vector<8x128xf32>
    %c3 = arith.constant 3 : index
    %109 = memref.load %arg1[%c3] : memref<30xf32, #tpu.memory_space<smem>>
    %c9 = arith.constant 9 : index
    %110 = memref.load %arg1[%c9] : memref<30xf32, #tpu.memory_space<smem>>
    %c15 = arith.constant 15 : index
    %111 = memref.load %arg1[%c15] : memref<30xf32, #tpu.memory_space<smem>>
    %c21 = arith.constant 21 : index
    %112 = memref.load %arg1[%c21] : memref<30xf32, #tpu.memory_space<smem>>
    %c27 = arith.constant 27 : index
    %113 = memref.load %arg1[%c27] : memref<30xf32, #tpu.memory_space<smem>>
    %114 = vector.broadcast %111 : f32 to vector<8x128xf32>
    %115 = arith.subf %6, %114 : vector<8x128xf32>
    %116 = vector.broadcast %110 : f32 to vector<8x128xf32>
    %117 = arith.mulf %116, %115 : vector<8x128xf32>
    %118 = vector.broadcast %111 : f32 to vector<8x128xf32>
    %119 = arith.subf %8, %118 : vector<8x128xf32>
    %120 = vector.broadcast %110 : f32 to vector<8x128xf32>
    %121 = arith.mulf %120, %119 : vector<8x128xf32>
    %122 = arith.negf %117 : vector<8x128xf32>
    %123 = math.exp %122 : vector<8x128xf32>
    %cst_15 = arith.constant 1.000000e+00 : f32
    %124 = vector.broadcast %cst_15 : f32 to vector<8x128xf32>
    %125 = arith.addf %124, %123 : vector<8x128xf32>
    %126 = arith.divf %124, %125 : vector<8x128xf32>
    %127 = arith.negf %121 : vector<8x128xf32>
    %128 = math.exp %127 : vector<8x128xf32>
    %cst_16 = arith.constant 1.000000e+00 : f32
    %129 = vector.broadcast %cst_16 : f32 to vector<8x128xf32>
    %130 = arith.addf %129, %128 : vector<8x128xf32>
    %131 = arith.divf %129, %130 : vector<8x128xf32>
    %132 = arith.subf %126, %131 : vector<8x128xf32>
    %133 = vector.broadcast %113 : f32 to vector<8x128xf32>
    %134 = arith.select %4, %133, %132 : vector<8x128xi1>, vector<8x128xf32>
    %135 = vector.broadcast %112 : f32 to vector<8x128xf32>
    %136 = arith.select %2, %135, %134 : vector<8x128xi1>, vector<8x128xf32>
    %cst_17 = arith.constant 9.99999996E-13 : f32
    %137 = vector.broadcast %cst_17 : f32 to vector<8x128xf32>
    %138 = arith.maximumf %136, %137 : vector<8x128xf32>
    %139 = vector.broadcast %109 : f32 to vector<8x128xf32>
    %140 = arith.mulf %139, %138 : vector<8x128xf32>
    %141 = arith.addf %108, %140 : vector<8x128xf32>
    %c4 = arith.constant 4 : index
    %142 = memref.load %arg1[%c4] : memref<30xf32, #tpu.memory_space<smem>>
    %c10 = arith.constant 10 : index
    %143 = memref.load %arg1[%c10] : memref<30xf32, #tpu.memory_space<smem>>
    %c16 = arith.constant 16 : index
    %144 = memref.load %arg1[%c16] : memref<30xf32, #tpu.memory_space<smem>>
    %c22 = arith.constant 22 : index
    %145 = memref.load %arg1[%c22] : memref<30xf32, #tpu.memory_space<smem>>
    %c28 = arith.constant 28 : index
    %146 = memref.load %arg1[%c28] : memref<30xf32, #tpu.memory_space<smem>>
    %147 = vector.broadcast %144 : f32 to vector<8x128xf32>
    %148 = arith.subf %6, %147 : vector<8x128xf32>
    %149 = vector.broadcast %143 : f32 to vector<8x128xf32>
    %150 = arith.mulf %149, %148 : vector<8x128xf32>
    %151 = vector.broadcast %144 : f32 to vector<8x128xf32>
    %152 = arith.subf %8, %151 : vector<8x128xf32>
    %153 = vector.broadcast %143 : f32 to vector<8x128xf32>
    %154 = arith.mulf %153, %152 : vector<8x128xf32>
    %155 = arith.negf %150 : vector<8x128xf32>
    %156 = math.exp %155 : vector<8x128xf32>
    %cst_18 = arith.constant 1.000000e+00 : f32
    %157 = vector.broadcast %cst_18 : f32 to vector<8x128xf32>
    %158 = arith.addf %157, %156 : vector<8x128xf32>
    %159 = arith.divf %157, %158 : vector<8x128xf32>
    %160 = arith.negf %154 : vector<8x128xf32>
    %161 = math.exp %160 : vector<8x128xf32>
    %cst_19 = arith.constant 1.000000e+00 : f32
    %162 = vector.broadcast %cst_19 : f32 to vector<8x128xf32>
    %163 = arith.addf %162, %161 : vector<8x128xf32>
    %164 = arith.divf %162, %163 : vector<8x128xf32>
    %165 = arith.subf %159, %164 : vector<8x128xf32>
    %166 = vector.broadcast %146 : f32 to vector<8x128xf32>
    %167 = arith.select %4, %166, %165 : vector<8x128xi1>, vector<8x128xf32>
    %168 = vector.broadcast %145 : f32 to vector<8x128xf32>
    %169 = arith.select %2, %168, %167 : vector<8x128xi1>, vector<8x128xf32>
    %cst_20 = arith.constant 9.99999996E-13 : f32
    %170 = vector.broadcast %cst_20 : f32 to vector<8x128xf32>
    %171 = arith.maximumf %169, %170 : vector<8x128xf32>
    %172 = vector.broadcast %142 : f32 to vector<8x128xf32>
    %173 = arith.mulf %172, %171 : vector<8x128xf32>
    %174 = arith.addf %141, %173 : vector<8x128xf32>
    %c5 = arith.constant 5 : index
    %175 = memref.load %arg1[%c5] : memref<30xf32, #tpu.memory_space<smem>>
    %c11 = arith.constant 11 : index
    %176 = memref.load %arg1[%c11] : memref<30xf32, #tpu.memory_space<smem>>
    %c17 = arith.constant 17 : index
    %177 = memref.load %arg1[%c17] : memref<30xf32, #tpu.memory_space<smem>>
    %c23 = arith.constant 23 : index
    %178 = memref.load %arg1[%c23] : memref<30xf32, #tpu.memory_space<smem>>
    %c29 = arith.constant 29 : index
    %179 = memref.load %arg1[%c29] : memref<30xf32, #tpu.memory_space<smem>>
    %180 = vector.broadcast %177 : f32 to vector<8x128xf32>
    %181 = arith.subf %6, %180 : vector<8x128xf32>
    %182 = vector.broadcast %176 : f32 to vector<8x128xf32>
    %183 = arith.mulf %182, %181 : vector<8x128xf32>
    %184 = vector.broadcast %177 : f32 to vector<8x128xf32>
    %185 = arith.subf %8, %184 : vector<8x128xf32>
    %186 = vector.broadcast %176 : f32 to vector<8x128xf32>
    %187 = arith.mulf %186, %185 : vector<8x128xf32>
    %188 = arith.negf %183 : vector<8x128xf32>
    %189 = math.exp %188 : vector<8x128xf32>
    %cst_21 = arith.constant 1.000000e+00 : f32
    %190 = vector.broadcast %cst_21 : f32 to vector<8x128xf32>
    %191 = arith.addf %190, %189 : vector<8x128xf32>
    %192 = arith.divf %190, %191 : vector<8x128xf32>
    %193 = arith.negf %187 : vector<8x128xf32>
    %194 = math.exp %193 : vector<8x128xf32>
    %cst_22 = arith.constant 1.000000e+00 : f32
    %195 = vector.broadcast %cst_22 : f32 to vector<8x128xf32>
    %196 = arith.addf %195, %194 : vector<8x128xf32>
    %197 = arith.divf %195, %196 : vector<8x128xf32>
    %198 = arith.subf %192, %197 : vector<8x128xf32>
    %199 = vector.broadcast %179 : f32 to vector<8x128xf32>
    %200 = arith.select %4, %199, %198 : vector<8x128xi1>, vector<8x128xf32>
    %201 = vector.broadcast %178 : f32 to vector<8x128xf32>
    %202 = arith.select %2, %201, %200 : vector<8x128xi1>, vector<8x128xf32>
    %cst_23 = arith.constant 9.99999996E-13 : f32
    %203 = vector.broadcast %cst_23 : f32 to vector<8x128xf32>
    %204 = arith.maximumf %202, %203 : vector<8x128xf32>
    %205 = vector.broadcast %175 : f32 to vector<8x128xf32>
    %206 = arith.mulf %205, %204 : vector<8x128xf32>
    %207 = arith.addf %174, %206 : vector<8x128xf32>
    %208 = math.log %207 : vector<8x128xf32>
    %c0_24 = arith.constant 0 : index
    %c0_25 = arith.constant 0 : index
    %209 = vector.load %arg3[%c0_24, %c0_25] : memref<8x128xf32, #tpu.memory_space<vmem>>, vector<8x128xf32>
    tpu.vector_store %arg3[%c0_24, %c0_25], %208 {strides = array<i32>} : memref<8x128xf32, #tpu.memory_space<vmem>>, vector<8x128xf32>,
    return
  }
  func.func @transform_0(%arg0: i32) -> i32 {
    %c0_i32 = arith.constant 0 : i32
    %c0_i32_0 = arith.constant 0 : i32
    return %c0_i32 : i32
  }
  func.func @transform_1(%arg0: i32) -> (i32, i32) {
    %c0_i32 = arith.constant 0 : i32
    %c0_i32_0 = arith.constant 0 : i32
    return %arg0, %c0_i32 : i32, i32
  }
  func.func @transform_2(%arg0: i32) -> (i32, i32) {
    %c0_i32 = arith.constant 0 : i32
    %c0_i32_0 = arith.constant 0 : i32
    return %arg0, %c0_i32 : i32, i32
  }
}

</mosaic_0001>

<llo_original>
// kernel: tpu_custom_call.1
$region0: #{tpu_custom_call.1}
  #allocation0 [shape = 'u32[]', space=smem, size = 0x4, offset = 0x4, fixed_abs, tag = 'smem constant byte address 0x4 - core index']
  #allocation1 [shape = 'u32[144,128]{1,0:T(1,128)}', space=vmem, size = 0x12000, scoped, tag = 'internal scratch']
  %s0 = inlined_call_operand.hbm [shape: f32[30], index: 0, kind: input, shape index: {}]
  %s1 = inlined_call_operand.hbm [shape: f32[8,128], index: 1, kind: input, shape index: {}]
  %s2 = inlined_call_operand.hbm [shape: f32[8,128], index: 2, kind: output, shape index: {}]
  %s3 = sld [smem:[#allocation0]]
  $region26: #{tpu_custom_call.1} parent=0
    _
  %s5 = ssub.s32 1, %s3
  %s6 = scalar_select 0, %s5, %s3
  $region1: #{tpu_custom_call.1} parent=0
    #allocation2 [shape = 'u8[512]{0}', space=smem, size = 0x200, scoped, tag = 'input window, operand 0, single buffered']
    #allocation3 [shape = 's32[1]{0}', space=sflag, size = 0x4, scoped, tag = 'scoped memory for tpu_custom_call.1']
    #allocation4 [shape = 's32[1]{0}', space=sflag, size = 0x4, scoped, tag = 'scoped memory for tpu_custom_call.1']
    #allocation5 [shape = 's32[1]{0}', space=sflag, size = 0x4, scoped, tag = 'scoped memory for tpu_custom_call.1']
    #allocation6 [shape = 'u8[4096]{0}', space=vmem, size = 0x1000, scoped, tag = 'input window, operand 1, single buffered']
    #allocation7 [shape = 'u8[4096]{0}', space=vmem, size = 0x1000, scoped, tag = 'output window, operand 0, single buffered']
    %7 = vsyncpa [#allocation5], 0
    %8 = vsyncpa [#allocation3], 0
    %9 = vsyncpa [#allocation4], 0
    // Predicated region
    $region2: #{tpu_custom_call.1} parent=1 // pred_check
      _
    $region3: #{tpu_custom_call.1} parent=1 // pred_check_branch
      %11 = sbr.rel (0) target = $region5
    $region4: #{tpu_custom_call.1} parent=1 // pred_region
      %s13 = ssub.s32 16, 16
      %14 = vsyncadd [#allocation5], %s13
      %17 = dma.hbm_to_smem %s0, 16, [#allocation2], [#allocation5]
    $region5: #{tpu_custom_call.1} parent=1 // pred_fallthru
      _
    // Predicated region
    $region6: #{tpu_custom_call.1} parent=1 // pred_check
      _
    $region7: #{tpu_custom_call.1} parent=1 // pred_check_branch
      %19 = sbr.rel (0) target = $region9
    $region8: #{tpu_custom_call.1} parent=1 // pred_region
      %s21 = ssub.s32 128, 128
      %22 = vsyncadd [#allocation3], %s21
      %s24 = sshll.u32 [#allocation6], 4
      %s25 = int_to_ptr.vmem [resolvable:$true] %s24
      %27 = dma.hbm_to_vmem [thread:$0]  %s1, 128, %s25, [#allocation3]
    $region9: #{tpu_custom_call.1} parent=1 // pred_fallthru
      _
    // Predicated region
    $region10: #{tpu_custom_call.1} parent=1 // pred_check
      _
    $region11: #{tpu_custom_call.1} parent=1 // pred_check_branch
      %29 = sbr.rel (0) target = $region13
    $region12: #{tpu_custom_call.1} parent=1 // pred_region
      %30 = dma.done [#allocation5], 16
    $region13: #{tpu_custom_call.1} parent=1 // pred_fallthru
      _
    // Predicated region
    $region14: #{tpu_custom_call.1} parent=1 // pred_check
      _
    $region15: #{tpu_custom_call.1} parent=1 // pred_check_branch
      %32 = sbr.rel (0) target = $region17
    $region16: #{tpu_custom_call.1} parent=1 // pred_region
      %33 = dma.done [#allocation3], 128
    $region17: #{tpu_custom_call.1} parent=1 // pred_fallthru
      _
    %34 = sfence
    %v35 = vld [vmem:[#allocation6] sm:$0xff]
    %vm36 = vcmp.lt.f32.partialorder %v35, 0.001
    %vm37 = vcmp.gt.f32.partialorder %v35, 14.999
    %v38 = vadd.f32 %v35, 0.5
    %v39 = vsub.f32 %v35, 0.5
    %s40 = sld [smem:[#allocation2]]
    %s41 = sld [smem:[#allocation2 + $0x6]]
    %s42 = sld [smem:[#allocation2 + $0xc]]
    %s43 = sld [smem:[#allocation2 + $0x12]]
    %s44 = sld [smem:[#allocation2 + $0x18]]
    %v45 = vstv %s42
    %v46 = vsub.f32 %v38, %v45
    %v47 = vstv %s41
    %v48 = vmul.f32 %v47, %v46
    %v49 = vsub.f32 %v39, %v45
    %v50 = vmul.f32 %v47, %v49
    %v51 = vxor.u32 %v48, 2147483648
    %v52 = vmul.f32 %v51, 1.442695
    %v53 = vpow.pop %v52
    %v54 = vadd.f32 %v53, 1.0
    %v55 = vrcp.pop %v54
    %v56 = vmul.f32 1.0, %v55
    %v57 = vxor.u32 %v50, 2147483648
    %v58 = vmul.f32 %v57, 1.442695
    %v59 = vpow.pop %v58
    %v60 = vadd.f32 %v59, 1.0
    %v61 = vrcp.pop %v60
    %v62 = vmul.f32 1.0, %v61
    %v63 = vsub.f32 %v56, %v62
    %v64 = vstv %s44
    %v65 = vsel %vm37, %v64, %v63
    %v66 = vstv %s43
    %v67 = vsel %vm36, %v66, %v65
    %v68 = vmax.f32 %v67, 1e-12
    %v69 = vstv %s40
    %v70 = vmul.f32 %v69, %v68
    %v71 = vadd.f32 %v70, 0.0
    %s72 = sld [smem:[#allocation2 + $0x1]]
    %s73 = sld [smem:[#allocation2 + $0x7]]
    %s74 = sld [smem:[#allocation2 + $0xd]]
    %s75 = sld [smem:[#allocation2 + $0x13]]
    %s76 = sld [smem:[#allocation2 + $0x19]]
    %v77 = vstv %s74
    %v78 = vsub.f32 %v38, %v77
    %v79 = vstv %s73
    %v80 = vmul.f32 %v79, %v78
    %v81 = vsub.f32 %v39, %v77
    %v82 = vmul.f32 %v79, %v81
    %v83 = vxor.u32 %v80, 2147483648
    %v84 = vmul.f32 %v83, 1.442695
    %v85 = vpow.pop %v84
    %v86 = vadd.f32 %v85, 1.0
    %v87 = vrcp.pop %v86
    %v88 = vmul.f32 1.0, %v87
    %v89 = vxor.u32 %v82, 2147483648
    %v90 = vmul.f32 %v89, 1.442695
    %v91 = vpow.pop %v90
    %v92 = vadd.f32 %v91, 1.0
    %v93 = vrcp.pop %v92
    %v94 = vmul.f32 1.0, %v93
    %v95 = vsub.f32 %v88, %v94
    %v96 = vstv %s76
    %v97 = vsel %vm37, %v96, %v95
    %v98 = vstv %s75
    %v99 = vsel %vm36, %v98, %v97
    %v100 = vmax.f32 %v99, 1e-12
    %v101 = vstv %s72
    %v102 = vmul.f32 %v101, %v100
    %v103 = vadd.f32 %v71, %v102
    %s104 = sld [smem:[#allocation2 + $0x2]]
    %s105 = sld [smem:[#allocation2 + $0x8]]
    %s106 = sld [smem:[#allocation2 + $0xe]]
    %s107 = sld [smem:[#allocation2 + $0x14]]
    %s108 = sld [smem:[#allocation2 + $0x1a]]
    %v109 = vstv %s106
    %v110 = vsub.f32 %v38, %v109
    %v111 = vstv %s105
    %v112 = vmul.f32 %v111, %v110
    %v113 = vsub.f32 %v39, %v109
    %v114 = vmul.f32 %v111, %v113
    %v115 = vxor.u32 %v112, 2147483648
    %v116 = vmul.f32 %v115, 1.442695
    %v117 = vpow.pop %v116
    %v118 = vadd.f32 %v117, 1.0
    %v119 = vrcp.pop %v118
    %v120 = vmul.f32 1.0, %v119
    %v121 = vxor.u32 %v114, 2147483648
    %v122 = vmul.f32 %v121, 1.442695
    %v123 = vpow.pop %v122
    %v124 = vadd.f32 %v123, 1.0
    %v125 = vrcp.pop %v124
    %v126 = vmul.f32 1.0, %v125
    %v127 = vsub.f32 %v120, %v126
    %v128 = vstv %s108
    %v129 = vsel %vm37, %v128, %v127
    %v130 = vstv %s107
    %v131 = vsel %vm36, %v130, %v129
    %v132 = vmax.f32 %v131, 1e-12
    %v133 = vstv %s104
    %v134 = vmul.f32 %v133, %v132
    %v135 = vadd.f32 %v103, %v134
    %s136 = sld [smem:[#allocation2 + $0x3]]
    %s137 = sld [smem:[#allocation2 + $0x9]]
    %s138 = sld [smem:[#allocation2 + $0xf]]
    %s139 = sld [smem:[#allocation2 + $0x15]]
    %s140 = sld [smem:[#allocation2 + $0x1b]]
    %v141 = vstv %s138
    %v142 = vsub.f32 %v38, %v141
    %v143 = vstv %s137
    %v144 = vmul.f32 %v143, %v142
    %v145 = vsub.f32 %v39, %v141
    %v146 = vmul.f32 %v143, %v145
    %v147 = vxor.u32 %v144, 2147483648
    %v148 = vmul.f32 %v147, 1.442695
    %v149 = vpow.pop %v148
    %v150 = vadd.f32 %v149, 1.0
    %v151 = vrcp.pop %v150
    %v152 = vmul.f32 1.0, %v151
    %v153 = vxor.u32 %v146, 2147483648
    %v154 = vmul.f32 %v153, 1.442695
    %v155 = vpow.pop %v154
    %v156 = vadd.f32 %v155, 1.0
    %v157 = vrcp.pop %v156
    %v158 = vmul.f32 1.0, %v157
    %v159 = vsub.f32 %v152, %v158
    %v160 = vstv %s140
    %v161 = vsel %vm37, %v160, %v159
    %v162 = vstv %s139
    %v163 = vsel %vm36, %v162, %v161
    %v164 = vmax.f32 %v163, 1e-12
    %v165 = vstv %s136
    %v166 = vmul.f32 %v165, %v164
    %v167 = vadd.f32 %v135, %v166
    %s168 = sld [smem:[#allocation2 + $0x4]]
    %s169 = sld [smem:[#allocation2 + $0xa]]
    %s170 = sld [smem:[#allocation2 + $0x10]]
    %s171 = sld [smem:[#allocation2 + $0x16]]
    %s172 = sld [smem:[#allocation2 + $0x1c]]
    %v173 = vstv %s170
    %v174 = vsub.f32 %v38, %v173
    %v175 = vstv %s169
    %v176 = vmul.f32 %v175, %v174
    %v177 = vsub.f32 %v39, %v173
    %v178 = vmul.f32 %v175, %v177
    %v179 = vxor.u32 %v176, 2147483648
    %v180 = vmul.f32 %v179, 1.442695
    %v181 = vpow.pop %v180
    %v182 = vadd.f32 %v181, 1.0
    %v183 = vrcp.pop %v182
    %v184 = vmul.f32 1.0, %v183
    %v185 = vxor.u32 %v178, 2147483648
    %v186 = vmul.f32 %v185, 1.442695
    %v187 = vpow.pop %v186
    %v188 = vadd.f32 %v187, 1.0
    %v189 = vrcp.pop %v188
    %v190 = vmul.f32 1.0, %v189
    %v191 = vsub.f32 %v184, %v190
    %v192 = vstv %s172
    %v193 = vsel %vm37, %v192, %v191
    %v194 = vstv %s171
    %v195 = vsel %vm36, %v194, %v193
    %v196 = vmax.f32 %v195, 1e-12
    %v197 = vstv %s168
    %v198 = vmul.f32 %v197, %v196
    %v199 = vadd.f32 %v167, %v198
    %s200 = sld [smem:[#allocation2 + $0x5]]
    %s201 = sld [smem:[#allocation2 + $0xb]]
    %s202 = sld [smem:[#allocation2 + $0x11]]
    %s203 = sld [smem:[#allocation2 + $0x17]]
    %s204 = sld [smem:[#allocation2 + $0x1d]]
    %v205 = vstv %s202
    %v206 = vsub.f32 %v38, %v205
    %v207 = vstv %s201
    %v208 = vmul.f32 %v207, %v206
    %v209 = vsub.f32 %v39, %v205
    %v210 = vmul.f32 %v207, %v209
    %v211 = vxor.u32 %v208, 2147483648
    %v212 = vmul.f32 %v211, 1.442695
    %v213 = vpow.pop %v212
    %v214 = vadd.f32 %v213, 1.0
    %v215 = vrcp.pop %v214
    %v216 = vmul.f32 1.0, %v215
    %v217 = vxor.u32 %v210, 2147483648
    %v218 = vmul.f32 %v217, 1.442695
    %v219 = vpow.pop %v218
    %v220 = vadd.f32 %v219, 1.0
    %v221 = vrcp.pop %v220
    %v222 = vmul.f32 1.0, %v221
    %v223 = vsub.f32 %v216, %v222
    %v224 = vstv %s204
    %v225 = vsel %vm37, %v224, %v223
    %v226 = vstv %s203
    %v227 = vsel %vm36, %v226, %v225
    %v228 = vmax.f32 %v227, 1e-12
    %v229 = vstv %s200
    %v230 = vmul.f32 %v229, %v228
    %v231 = vadd.f32 %v199, %v230
    %v232 = vlog2.pop %v231
    %v233 = vmul.f32 %v232, 0.6931472
    %234 = vst [vmem:[#allocation7] sm:$0xff] %v233
    // Predicated region
    $region18: #{tpu_custom_call.1} parent=1 // pred_check
      _
    $region19: #{tpu_custom_call.1} parent=1 // pred_check_branch
      %236 = sbr.rel (0) target = $region21
    $region20: #{tpu_custom_call.1} parent=1 // pred_region
      %s238 = ssub.s32 128, 128
      %239 = vsyncadd [#allocation4], %s238
      %s241 = sshll.u32 [#allocation7], 4
      %s242 = int_to_ptr.vmem [resolvable:$true] %s241
      %244 = dma.vmem_to_hbm [thread:$0]  %s242, 128, %s2, [#allocation4]
    $region21: #{tpu_custom_call.1} parent=1 // pred_fallthru
      _
    // Predicated region
    $region22: #{tpu_custom_call.1} parent=1 // pred_check
      _
    $region23: #{tpu_custom_call.1} parent=1 // pred_check_branch
      %246 = sbr.rel (0) target = $region25
    $region24: #{tpu_custom_call.1} parent=1 // pred_region
      %247 = dma.done [#allocation4], 128
    $region25: #{tpu_custom_call.1} parent=1 // pred_fallthru
      _
    %248 = vsyncpa [#allocation3], 1
    %249 = vsyncpa [#allocation4], 1
    %250 = vsyncpa [#allocation5], 1

</llo_original>
